<compile_context>
chip_gen: v7x
topology: tpu7x:2x2x1
jax: 0.10.0
libtpu: 0.0.40
codegen_flags: <defaults>
</compile_context>

<pallas_src>
import functools

import jax
import jax.numpy as jnp
from jax.experimental import pallas as pl
from jax.experimental.pallas import tpu as pltpu


def _hopfield_kernel(s_ref, x_ref, o_ref, m_sc, l_sc, acc_sc, *,
                     beta, n_true, tile_n, mask_cols):
    # s_ref  : VMEM (tb, d)  f32/bf16  -- state rows (resident across the N grid)
    # x_ref  : VMEM (d, tn)  f32/bf16  -- current block of stored patterns
    # o_ref  : VMEM (tb, d)  f32       -- new states (written at last N block)
    # m_sc   : VMEM (tb, 1)  f32       -- running max of scaled scores
    # l_sc   : VMEM (tb, 1)  f32       -- running softmax denominator
    # acc_sc : VMEM (tb, d)  f32       -- un-normalized new-state accumulator
    j = pl.program_id(1)

    @pl.when(j == 0)
    def _():
        m_sc[...] = jnp.full_like(m_sc, -jnp.inf)
        l_sc[...] = jnp.zeros_like(l_sc)
        acc_sc[...] = jnp.zeros_like(acc_sc)

    # Fold beta into the small (tb, d) state rows (linear, so identical result)
    # instead of multiplying the (tb, tn) score block.
    s = (s_ref[...].astype(jnp.float32) * beta).astype(x_ref.dtype)

    # scores (tb, tn) = (beta * states) @ X_block   -- contraction on d (MXU)
    z = jnp.dot(s, x_ref[...], preferred_element_type=jnp.float32)

    if mask_cols:
        # Mask padded pattern columns (every block contains >=1 valid column,
        # so the running max stays finite).
        col = jax.lax.broadcasted_iota(jnp.int32, z.shape, 1) + j * tile_n
        z = jnp.where(col < n_true, z, -jnp.inf)

    # Online (flash-style) softmax update.
    m_prev = m_sc[...]
    m_new = jnp.maximum(m_prev, jnp.max(z, axis=-1, keepdims=True))
    alpha = jnp.exp(m_prev - m_new)
    p = jnp.exp(z - m_new)

    l_sc[...] = alpha * l_sc[...] + jnp.sum(p, axis=-1, keepdims=True)

    # acc (tb, d) += P (tb, tn) . X_block (d, tn)^T  -- contract on the pattern
    # axis directly, so no duplicated X^T input is needed.
    upd = jax.lax.dot_general(
        p.astype(x_ref.dtype), x_ref[...],
        dimension_numbers=(((1,), (1,)), ((), ())),
        preferred_element_type=jnp.float32)
    acc_sc[...] = alpha * acc_sc[...] + upd
    m_sc[...] = m_new

    @pl.when(j == pl.num_programs(1) - 1)
    def _():
        # Exact normalization (no approx reciprocal) so the fp32 path matches
        # the reference to ~1e-6.
        o_ref[...] = (acc_sc[...] / l_sc[...]).astype(o_ref.dtype)


def _vmem_limit_bytes():
    """Per-generation VMEM cap with headroom (v7x has only 64 MiB physical)."""
    try:
        cap = int(pltpu.get_tpu_info().vmem_capacity_bytes)
    except Exception:
        return 48 * 1024 * 1024                    # safe on every generation
    return min(cap - cap // 8, 112 * 1024 * 1024)  # ~56 MiB on v7x, 112 MiB on v5e/v6e


def hopfield_forward(X, state, B=1.0, dtype=jnp.float32, tile_n=512, tile_bt=256):
    """One Hopfield update: new_state = X @ softmax(B * (X.T @ state)).

    X:      (d, N) stored patterns (a (d,) vector is treated as one pattern).
    state:  (d,) single state or (Bt, d) batch of states (row-major).
    dtype:  storage dtype for X / state (bf16 halves HBM traffic; accumulation
            is always fp32 on the MXU).
    Returns float32, same leading shape as `state`.
    """
    X = jnp.asarray(X)
    if X.ndim == 1:
        X = X.reshape(-1, 1)
    d, N = X.shape

    state = jnp.asarray(state)
    squeeze = state.ndim == 1
    s_rows = state.reshape(1, d) if squeeze else state
    Bt = s_rows.shape[0]

    # ---- tiling (block dims must be full extents or (8,128)-aligned) -------
    if N <= tile_n:
        tn, n_pad = N, N                       # single N block (full dim)
    else:
        tn = int(tile_n)                       # multiple of 128
        n_pad = pl.cdiv(N, tn) * tn
    if Bt <= tile_bt:
        tb, bt_pad = Bt, Bt                    # single Bt block (full dim)
    else:
        tb = int(tile_bt)                      # multiple of 8
        bt_pad = pl.cdiv(Bt, tb) * tb

    Xc = X.astype(dtype)
    if n_pad != N:                             # padded columns masked in-kernel
        Xc = jnp.pad(Xc, ((0, 0), (0, n_pad - N)))
    Sc = s_rows.astype(dtype)
    if bt_pad != Bt:                           # padded rows sliced off below
        Sc = jnp.pad(Sc, ((0, bt_pad - Bt), (0, 0)))

    grid = (bt_pad // tb, n_pad // tn)         # (Bt blocks, N blocks)

    kernel = functools.partial(
        _hopfield_kernel,
        beta=float(B), n_true=int(N), tile_n=int(tn), mask_cols=(n_pad != N))

    itemsize = jnp.dtype(dtype).itemsize
    cost = pl.CostEstimate(
        flops=4 * bt_pad * n_pad * d,
        transcendentals=bt_pad * n_pad,
        bytes_accessed=d * n_pad * itemsize + bt_pad * d * itemsize + bt_pad * d * 4)

    out = pl.pallas_call(
        kernel,
        out_shape=jax.ShapeDtypeStruct((bt_pad, d), jnp.float32),
        grid=grid,
        in_specs=[
            pl.BlockSpec((tb, d), lambda i, j: (i, 0)),   # states: resident over N
            pl.BlockSpec((d, tn), lambda i, j: (0, j)),   # X: streamed over N
        ],
        out_specs=pl.BlockSpec((tb, d), lambda i, j: (i, 0)),
        scratch_shapes=[
            pltpu.VMEM((tb, 1), jnp.float32),             # running max
            pltpu.VMEM((tb, 1), jnp.float32),             # running denominator
            pltpu.VMEM((tb, d), jnp.float32),             # accumulator
        ],
        compiler_params=pltpu.CompilerParams(
            dimension_semantics=("parallel", "arbitrary"),
            vmem_limit_bytes=_vmem_limit_bytes()),
        cost_estimate=cost,
    )(Sc, Xc)

    out = out[:Bt]
    return out.reshape(d) if squeeze else out


def _reference_forward(X, state, B=1.0):
    """Pure-JAX reference matching the PyTorch module (exact f32 matmuls)."""
    hp = jax.lax.Precision.HIGHEST
    ip = jnp.matmul(X.T, state, precision=hp)        # (N,)
    p = jax.nn.softmax(B * ip, axis=0)                # (N,)
    return jnp.matmul(X, p, precision=hp)             # (d,)


if __name__ == "__main__":
    key = jax.random.PRNGKey(0)
    kx, ks, kb, kx2, ks2 = jax.random.split(key, 5)

    # --- small shapes consistent with the module's forward -------------------
    d, N, Bt = 32, 8, 4
    B = 1.0
    X = jax.random.normal(kx, (d, N), dtype=jnp.float32)
    state = jax.random.normal(ks, (d,), dtype=jnp.float32)
    state_batch = jax.random.normal(kb, (Bt, d), dtype=jnp.float32)

    # single-state update (matches the PyTorch forward exactly)
    new_state = jax.block_until_ready(hopfield_forward(X, state, B=B))
    ref = _reference_forward(X, state, B=B)
    assert new_state.shape == (d,)
    assert jnp.allclose(new_state, ref, atol=2e-3, rtol=2e-3), (
        f"single-state max abs err = {jnp.max(jnp.abs(new_state - ref))}")

    # batched-state update (one real GEMM per matmul)
    new_batch = jax.block_until_ready(hopfield_forward(X, state_batch, B=B))
    ref_batch = jnp.stack([_reference_forward(X, state_batch[i], B=B)
                           for i in range(Bt)], axis=0)
    assert new_batch.shape == (Bt, d)
    assert jnp.allclose(new_batch, ref_batch, atol=2e-3, rtol=2e-3), (
        f"batched max abs err = {jnp.max(jnp.abs(new_batch - ref_batch))}")

    # larger, tiled path: N > tile_n so X streams through the online-softmax
    # grid (2 blocks of 512; second block is partially masked since N2=640).
    d2, N2, Bt2 = 128, 640, 8
    X2 = jax.random.normal(kx2, (d2, N2), dtype=jnp.float32)
    S2 = jax.random.normal(ks2, (Bt2, d2), dtype=jnp.float32)
    out2 = jax.block_until_ready(hopfield_forward(X2, S2, B=0.5, tile_n=512))
    ref2 = jnp.stack([_reference_forward(X2, S2[i], B=0.5) for i in range(Bt2)],
                     axis=0)
    assert out2.shape == (Bt2, d2)
    assert jnp.allclose(out2, ref2, atol=2e-3, rtol=2e-3), (
        f"tiled max abs err = {jnp.max(jnp.abs(out2 - ref2))}")

    # bf16-storage knob (fp32 accumulation), looser tolerance
    new_bf16 = jax.block_until_ready(
        hopfield_forward(X, state, B=B, dtype=jnp.bfloat16))
    assert jnp.allclose(new_bf16, ref, atol=5e-2, rtol=5e-2), (
        f"bf16 max abs err = {jnp.max(jnp.abs(new_bf16 - ref))}")

    print("KERNEL_OK")
</pallas_src>

<mosaic_0001>
module attributes {stable_mosaic.version = 11 : i64} {
  func.func @_hopfield_kernel(%arg0: i32, %arg1: i32, %arg2: memref<1x32xf32, #tpu.memory_space<vmem>>, %arg3: memref<32x8xf32, #tpu.memory_space<vmem>>, %arg4: memref<1x32xf32, #tpu.memory_space<vmem>>, %arg5: memref<1x1xf32, #tpu.memory_space<vmem>>, %arg6: memref<1x1xf32, #tpu.memory_space<vmem>>, %arg7: memref<1x32xf32, #tpu.memory_space<vmem>>) attributes {dimension_semantics = [#tpu.dimension_semantics<parallel>, #tpu.dimension_semantics<arbitrary>], iteration_bounds = array<i64: 1, 1>, scalar_prefetch = 0 : i64, scratch_operands = 3 : i64, tpu.core_type = #tpu.core_type<tc>, window_params = [{transform_indices = @transform_0, window_bounds = array<i64: 1, 32>}, {transform_indices = @transform_1, window_bounds = array<i64: 32, 8>}, {transform_indices = @transform_2, window_bounds = array<i64: 1, 32>}]} {
    %c0_i32 = arith.constant 0 : i32
    %0 = arith.cmpi eq, %arg1, %c0_i32 : i32
    %1 = arith.extui %0 : i1 to i32
    %c0_i32_0 = arith.constant 0 : i32
    %2 = arith.cmpi ne, %1, %c0_i32_0 : i32
    scf.if %2 {
      %cst_24 = arith.constant 0xFF800000 : f32
      %34 = vector.broadcast %cst_24 : f32 to vector<1x1xf32>
      %c0_25 = arith.constant 0 : index
      %c0_26 = arith.constant 0 : index
      %35 = vector.load %arg5[%c0_25, %c0_26] : memref<1x1xf32, #tpu.memory_space<vmem>>, vector<1x1xf32>
      tpu.vector_store %arg5[%c0_25, %c0_26], %34 {strides = array<i32>} : memref<1x1xf32, #tpu.memory_space<vmem>>, vector<1x1xf32>,
      %cst_27 = arith.constant 0.000000e+00 : f32
      %36 = vector.broadcast %cst_27 : f32 to vector<1x1xf32>
      %c0_28 = arith.constant 0 : index
      %c0_29 = arith.constant 0 : index
      %37 = vector.load %arg6[%c0_28, %c0_29] : memref<1x1xf32, #tpu.memory_space<vmem>>, vector<1x1xf32>
      tpu.vector_store %arg6[%c0_28, %c0_29], %36 {strides = array<i32>} : memref<1x1xf32, #tpu.memory_space<vmem>>, vector<1x1xf32>,
      %cst_30 = arith.constant 0.000000e+00 : f32
      %38 = vector.broadcast %cst_30 : f32 to vector<1x32xf32>
      %c0_31 = arith.constant 0 : index
      %c0_32 = arith.constant 0 : index
      %39 = vector.load %arg7[%c0_31, %c0_32] : memref<1x32xf32, #tpu.memory_space<vmem>>, vector<1x32xf32>
      tpu.vector_store %arg7[%c0_31, %c0_32], %38 {strides = array<i32>} : memref<1x32xf32, #tpu.memory_space<vmem>>, vector<1x32xf32>,
    } else {
    }
    %c0 = arith.constant 0 : index
    %c0_1 = arith.constant 0 : index
    %3 = vector.load %arg2[%c0, %c0_1] : memref<1x32xf32, #tpu.memory_space<vmem>>, vector<1x32xf32>
    %cst = arith.constant 1.000000e+00 : f32
    %4 = vector.broadcast %cst : f32 to vector<1x32xf32>
    %5 = arith.mulf %3, %4 : vector<1x32xf32>
    %c0_2 = arith.constant 0 : index
    %c0_3 = arith.constant 0 : index
    %6 = vector.load %arg3[%c0_2, %c0_3] : memref<32x8xf32, #tpu.memory_space<vmem>>, vector<32x8xf32>
    %cst_4 = arith.constant dense<0.000000e+00> : vector<1x8xf32>
    %7 = tpu.matmul %5, %6, %cst_4 {dimension_numbers = #tpu.dot_dimension_numbers<[1], [0], [0], [1], [0, 0, 1, 1], [], []>} : vector<1x32xf32>, vector<32x8xf32>, vector<1x8xf32> -> vector<1x8xf32>
    %c0_5 = arith.constant 0 : index
    %c0_6 = arith.constant 0 : index
    %8 = vector.load %arg5[%c0_5, %c0_6] : memref<1x1xf32, #tpu.memory_space<vmem>>, vector<1x1xf32>
    %cst_7 = arith.constant dense<0xFF800000> : vector<1xf32>
    %9 = vector.multi_reduction <maximumf>, %7, %cst_7 [1] : vector<1x8xf32> to vector<1xf32>
    %10 = vector.shape_cast %9 : vector<1xf32> to vector<1x1xf32>
    %11 = arith.maximumf %8, %10 : vector<1x1xf32>
    %12 = arith.subf %8, %11 : vector<1x1xf32>
    %13 = math.exp %12 : vector<1x1xf32>
    %14 = vector.broadcast %11 : vector<1x1xf32> to vector<1x8xf32>
    %15 = arith.subf %7, %14 : vector<1x8xf32>
    %16 = math.exp %15 : vector<1x8xf32>
    %c0_8 = arith.constant 0 : index
    %c0_9 = arith.constant 0 : index
    %17 = vector.load %arg6[%c0_8, %c0_9] : memref<1x1xf32, #tpu.memory_space<vmem>>, vector<1x1xf32>
    %18 = arith.mulf %13, %17 : vector<1x1xf32>
    %cst_10 = arith.constant dense<0.000000e+00> : vector<1xf32>
    %19 = vector.multi_reduction <add>, %16, %cst_10 [1] : vector<1x8xf32> to vector<1xf32>
    %20 = vector.shape_cast %19 : vector<1xf32> to vector<1x1xf32>
    %21 = arith.addf %18, %20 : vector<1x1xf32>
    %c0_11 = arith.constant 0 : index
    %c0_12 = arith.constant 0 : index
    %22 = vector.load %arg6[%c0_11, %c0_12] : memref<1x1xf32, #tpu.memory_space<vmem>>, vector<1x1xf32>
    tpu.vector_store %arg6[%c0_11, %c0_12], %21 {strides = array<i32>} : memref<1x1xf32, #tpu.memory_space<vmem>>, vector<1x1xf32>,
    %c0_13 = arith.constant 0 : index
    %c0_14 = arith.constant 0 : index
    %23 = vector.load %arg3[%c0_13, %c0_14] : memref<32x8xf32, #tpu.memory_space<vmem>>, vector<32x8xf32>
    %cst_15 = arith.constant dense<0.000000e+00> : vector<1x32xf32>
    %24 = tpu.matmul %16, %23, %cst_15 {dimension_numbers = #tpu.dot_dimension_numbers<[1], [1], [0], [0], [0, 0, 1, 0], [], []>} : vector<1x8xf32>, vector<32x8xf32>, vector<1x32xf32> -> vector<1x32xf32>
    %c0_16 = arith.constant 0 : index
    %c0_17 = arith.constant 0 : index
    %25 = vector.load %arg7[%c0_16, %c0_17] : memref<1x32xf32, #tpu.memory_space<vmem>>, vector<1x32xf32>
    %26 = vector.broadcast %13 : vector<1x1xf32> to vector<1x32xf32>
    %27 = arith.mulf %26, %25 : vector<1x32xf32>
    %28 = arith.addf %27, %24 : vector<1x32xf32>
    %c0_18 = arith.constant 0 : index
    %c0_19 = arith.constant 0 : index
    %29 = vector.load %arg7[%c0_18, %c0_19] : memref<1x32xf32, #tpu.memory_space<vmem>>, vector<1x32xf32>
    tpu.vector_store %arg7[%c0_18, %c0_19], %28 {strides = array<i32>} : memref<1x32xf32, #tpu.memory_space<vmem>>, vector<1x32xf32>,
    %c0_20 = arith.constant 0 : index
    %c0_21 = arith.constant 0 : index
    %30 = vector.load %arg5[%c0_20, %c0_21] : memref<1x1xf32, #tpu.memory_space<vmem>>, vector<1x1xf32>
    tpu.vector_store %arg5[%c0_20, %c0_21], %11 {strides = array<i32>} : memref<1x1xf32, #tpu.memory_space<vmem>>, vector<1x1xf32>,
    %c0_i32_22 = arith.constant 0 : i32
    %31 = arith.cmpi eq, %arg1, %c0_i32_22 : i32
    %32 = arith.extui %31 : i1 to i32
    %c0_i32_23 = arith.constant 0 : i32
    %33 = arith.cmpi ne, %32, %c0_i32_23 : i32
    scf.if %33 {
      %c0_24 = arith.constant 0 : index
      %c0_25 = arith.constant 0 : index
      %34 = vector.load %arg7[%c0_24, %c0_25] : memref<1x32xf32, #tpu.memory_space<vmem>>, vector<1x32xf32>
      %c0_26 = arith.constant 0 : index
      %c0_27 = arith.constant 0 : index
      %35 = vector.load %arg6[%c0_26, %c0_27] : memref<1x1xf32, #tpu.memory_space<vmem>>, vector<1x1xf32>
      %36 = vector.broadcast %35 : vector<1x1xf32> to vector<1x32xf32>
      %37 = arith.divf %34, %36 : vector<1x32xf32>
      %c0_28 = arith.constant 0 : index
      %c0_29 = arith.constant 0 : index
      %38 = vector.load %arg4[%c0_28, %c0_29] : memref<1x32xf32, #tpu.memory_space<vmem>>, vector<1x32xf32>
      tpu.vector_store %arg4[%c0_28, %c0_29], %37 {strides = array<i32>} : memref<1x32xf32, #tpu.memory_space<vmem>>, vector<1x32xf32>,
    } else {
    }
    return
  }
  func.func @transform_0(%arg0: i32, %arg1: i32) -> (i32, i32) {
    %c0_i32 = arith.constant 0 : i32
    %c0_i32_0 = arith.constant 0 : i32
    return %arg0, %c0_i32 : i32, i32
  }
  func.func @transform_1(%arg0: i32, %arg1: i32) -> (i32, i32) {
    %c0_i32 = arith.constant 0 : i32
    %c0_i32_0 = arith.constant 0 : i32
    return %c0_i32, %arg1 : i32, i32
  }
  func.func @transform_2(%arg0: i32, %arg1: i32) -> (i32, i32) {
    %c0_i32 = arith.constant 0 : i32
    %c0_i32_0 = arith.constant 0 : i32
    return %arg0, %c0_i32 : i32, i32
  }
}

</mosaic_0001>

<llo_original>
// kernel: tpu_custom_call.1
$region0: #{tpu_custom_call.1}
  #allocation0 [shape = 'u32[]', space=smem, size = 0x4, offset = 0x4, fixed_abs, tag = 'smem constant byte address 0x4 - core index']
  #allocation1 [shape = 'u32[144,128]{1,0:T(1,128)}', space=vmem, size = 0x12000, scoped, tag = 'internal scratch']
  #allocation2 [shape = 'f32[1,1]{1,0:T(1,128)}', space=vmem, size = 0x200, scoped, tag = 'scratch operand']
  #allocation3 [shape = 'f32[1,1]{1,0:T(1,128)}', space=vmem, size = 0x200, scoped, tag = 'scratch operand']
  #allocation4 [shape = 'f32[1,32]{1,0:T(1,128)}', space=vmem, size = 0x200, scoped, tag = 'scratch operand']
  %s0 = inlined_call_operand.vmem [shape: f32[1,32], index: 0, kind: input, shape index: {}]
  %s1 = inlined_call_operand.vmem [shape: f32[32,8], index: 1, kind: input, shape index: {}]
  %s2 = inlined_call_operand.hbm [shape: f32[1,32], index: 2, kind: output, shape index: {}]
  %s3 = sld [smem:[#allocation0]]
  $region26: #{tpu_custom_call.1} parent=0
    _
  %s5 = ssub.s32 1, %s3
  %s6 = scalar_select 0, %s5, %s3
  $region1: #{tpu_custom_call.1} parent=0
    #allocation5 [shape = 'u8[512]{0}', space=vmem, size = 0x400, scoped, tag = 'output window, operand 0, single buffered']
    #allocation6 [shape = 's32[1]{0}', space=sflag, size = 0x4, scoped, tag = 'scoped memory for tpu_custom_call.1']
    %7 = vsyncpa [#allocation6], 0
    // Predicated region
    $region2: #{tpu_custom_call.1} parent=1 // pred_check
      _
    $region3: #{tpu_custom_call.1} parent=1 // pred_check_branch
      %9 = sbr.rel (0) target = $region5
    $region4: #{tpu_custom_call.1} parent=1 // pred_region
      _
    $region5: #{tpu_custom_call.1} parent=1 // pred_fallthru
      _
    // Predicated region
    $region6: #{tpu_custom_call.1} parent=1 // pred_check
      _
    $region7: #{tpu_custom_call.1} parent=1 // pred_check_branch
      %11 = sbr.rel (0) target = $region9
    $region8: #{tpu_custom_call.1} parent=1 // pred_region
      _
    $region9: #{tpu_custom_call.1} parent=1 // pred_fallthru
      _
    %p12 = scmp.eq.s32.totalorder 0, 0
    // Predicated region
    $region10: #{tpu_custom_call.1} parent=1 // pred_check
      %p13 = pneg %p12
    $region11: #{tpu_custom_call.1} parent=1 // pred_check_branch
      %15 = sbr.rel (%p13) target = $region13
    $region12: #{tpu_custom_call.1} parent=1 // pred_region
      %vm16 = vcmask 0
      %17 = vst.msk [vmem:[#allocation2] sm:$0x1] %vm16, -inf
      %18 = vst.msk [vmem:[#allocation3] sm:$0x1] %vm16, 0.0
      %vm19 = vcmask 253952
      %20 = vst.msk [vmem:[#allocation4] sm:$0x1] %vm19, 0.0
    $region13: #{tpu_custom_call.1} parent=1 // pred_fallthru
      _
    %v21 = vld [vmem:[%s0] sm:$0x1]
    %v22 = vld [vmem:[%s1] sm:$0xff]
    %v23 = vld [vmem:[%s1 + $0x8] sm:$0xff]
    %v24 = vld [vmem:[%s1 + $0x10] sm:$0xff]
    %v25 = vld [vmem:[%s1 + $0x18] sm:$0xff]
    %vm26 = vcmask 261120
    %v28 = vsel %vm26, %v21, 0
    %30 = vmatprep.subr.mxu0 0.0
    %31 = vmatpush1.msra.mxu0 %v22
    %32 = vmatprep.subr.mxu0 0.0
    %33 = vmatpush1.msra.mxu0 %v23
    %34 = vmatprep.subr.mxu0 0.0
    %35 = vmatpush1.msra.mxu0 %v24
    %36 = vmatprep.subr.mxu0 0.0
    %37 = vmatpush1.msra.mxu0 %v25
    %38 = vmatprep.subr.mxu0 0.0
    %39 = vmatpush1.msra.mxu0 0.0
    %40 = vmatprep.subr.mxu0 0.0
    %41 = vmatpush1.msra.mxu0 0.0
    %42 = vmatprep.subr.mxu0 0.0
    %43 = vmatpush1.msra.mxu0 0.0
    %44 = vmatprep.subr.mxu0 0.0
    %45 = vmatpush1.msra.mxu0 0.0
    %46 = vmatprep.subr.mxu0 0.0
    %47 = vmatpush1.msra.mxu0 0.0
    %48 = vmatprep.subr.mxu0 0.0
    %49 = vmatpush1.msra.mxu0 0.0
    %50 = vmatprep.subr.mxu0 0.0
    %51 = vmatpush1.msra.mxu0 0.0
    %52 = vmatprep.subr.mxu0 0.0
    %53 = vmatpush1.msra.mxu0 0.0
    %54 = vmatprep.subr.mxu0 0.0
    %55 = vmatpush1.msra.mxu0 0.0
    %56 = vmatprep.subr.mxu0 0.0
    %57 = vmatpush1.msra.mxu0 0.0
    %58 = vmatprep.subr.mxu0 0.0
    %59 = vmatpush1.msra.mxu0 0.0
    %60 = vmatprep.subr.mxu0 0.0
    %61 = vmatpush1.msra.mxu0 0.0
    %62 = vmatprep.subr.mxu0 0.0
    %63 = vmatpush1.msra.mxu0 0.0
    %64 = vmatprep.subr.mxu0 0.0
    %65 = vmatpush1.msra.mxu0 0.0
    %66 = vmatprep.subr.mxu0 0.0
    %67 = vmatpush1.msra.mxu0 0.0
    %68 = vmatprep.subr.mxu0 0.0
    %69 = vmatpush1.msra.mxu0 0.0
    %70 = vmatprep.subr.mxu0 0.0
    %71 = vmatpush1.msra.mxu0 0.0
    %72 = vmatprep.subr.mxu0 0.0
    %73 = vmatpush1.msra.mxu0 0.0
    %74 = vmatprep.subr.mxu0 0.0
    %75 = vmatpush1.msra.mxu0 0.0
    %76 = vmatprep.subr.mxu0 0.0
    %77 = vmatpush1.msra.mxu0 0.0
    %78 = vmatprep.subr.mxu0 0.0
    %79 = vmatpush1.msra.mxu0 0.0
    %80 = vmatprep.subr.mxu0 0.0
    %81 = vmatpush1.msra.mxu0 0.0
    %82 = vmatprep.subr.mxu0 0.0
    %83 = vmatpush1.msra.mxu0 0.0
    %84 = vmatprep.subr.mxu0 0.0
    %85 = vmatpush1.msra.mxu0 0.0
    %86 = vmatprep.subr.mxu0 0.0
    %87 = vmatpush1.msra.mxu0 0.0
    %88 = vmatprep.subr.mxu0 0.0
    %89 = vmatpush1.msra.mxu0 0.0
    %90 = vmatprep.subr.mxu0 0.0
    %91 = vmatpush1.msra.mxu0 0.0
    %92 = vmatprep.subr.mxu0 0.0
    %93 = vmatpush1.msra.mxu0 0.0
    %94 = vmatprep.mubr.f32.mxu0 0.0
    %95 = vmatmul.mubr.f32.gmra.mrb[0].mxu0 %v28
    %v96 = vpop.f32.mrb[0].mxu0
    %v97 = vadd.f32 0.0, %v96
    %v98 = vpop.f32.mrb[0].mxu0
    %99 = vdwg.mxu0
    %v100 = vld [vmem:[#allocation2] sm:$0x1]
    %vm101 = vcmask 57344
    %v102 = vsel %vm101, %v97, -inf
    %103 = vmax.xlane.f32.xlu0 %v102
    %v104 = vpop.xlane.xlu0 %103
    %v105 = vmax.f32 %v100, %v104
    %v106 = vsub.f32 %v100, %v105
    %v107 = vmul.f32 %v106, 1.442695
    %v108 = vpow.pop %v107
    %110 = vset.pattern.permute.xlu0 0
    %111 = vperm.xlu0 %110, %v105
    %v112 = vpop.permute.xlu0 %111
    %v114 = vlaneseq
    %v115 = vshrl.u32 %v114, 7
    %v116 = vsub.s32 0, %v115
    %v117 = vrot.slane %v112, %v116
    %v118 = vsub.f32 %v97, %v117
    %v119 = vmul.f32 %v118, 1.442695
    %v120 = vpow.pop %v119
    %v121 = vld [vmem:[#allocation3] sm:$0x1]
    %v122 = vmul.f32 %v108, %v121
    %v123 = vsel %vm101, %v120, 0.0
    %124 = vadd.xlane.f32.xlu0 %v123
    %v125 = vpop.xlane.xlu0 %124
    %v126 = vadd.f32 %v122, %v125
    %vm127 = vcmask 0
    %128 = vst.msk [vmem:[#allocation3] sm:$0x1] %vm127, %v126
    %v129 = vld [vmem:[%s1] sm:$0xff]
    %v130 = vld [vmem:[%s1 + $0x8] sm:$0xff]
    %v131 = vld [vmem:[%s1 + $0x10] sm:$0xff]
    %v132 = vld [vmem:[%s1 + $0x18] sm:$0xff]
    %vm133 = vcmask 64512
    %v135 = vsel %vm133, %v120, 0
    %v138 = vsel %vm133, %v129, 0
    %v141 = vsel %vm133, %v130, 0
    %v144 = vsel %vm133, %v131, 0
    %v147 = vsel %vm133, %v132, 0
    %149 = vmatprep.subr.mxu0 0.0
    %150 = vmatpush1.xpose.msra.mxu0 %v138
    %151 = vmatprep.subr.mxu0 0.0
    %152 = vmatpush1.xpose.msra.mxu0 %v141
    %153 = vmatprep.subr.mxu0 0.0
    %154 = vmatpush1.xpose.msra.mxu0 %v144
    %155 = vmatprep.subr.mxu0 0.0
    %156 = vmatpush1.xpose.msra.mxu0 %v147
    %157 = vmatprep.subr.mxu0 0.0
    %158 = vmatpush1.xpose.msra.mxu0 0.0
    %159 = vmatprep.subr.mxu0 0.0
    %160 = vmatpush1.xpose.msra.mxu0 0.0
    %161 = vmatprep.subr.mxu0 0.0
    %162 = vmatpush1.xpose.msra.mxu0 0.0
    %163 = vmatprep.subr.mxu0 0.0
    %164 = vmatpush1.xpose.msra.mxu0 0.0
    %165 = vmatprep.subr.mxu0 0.0
    %166 = vmatpush1.xpose.msra.mxu0 0.0
    %167 = vmatprep.subr.mxu0 0.0
    %168 = vmatpush1.xpose.msra.mxu0 0.0
    %169 = vmatprep.subr.mxu0 0.0
    %170 = vmatpush1.xpose.msra.mxu0 0.0
    %171 = vmatprep.subr.mxu0 0.0
    %172 = vmatpush1.xpose.msra.mxu0 0.0
    %173 = vmatprep.subr.mxu0 0.0
    %174 = vmatpush1.xpose.msra.mxu0 0.0
    %175 = vmatprep.subr.mxu0 0.0
    %176 = vmatpush1.xpose.msra.mxu0 0.0
    %177 = vmatprep.subr.mxu0 0.0
    %178 = vmatpush1.xpose.msra.mxu0 0.0
    %179 = vmatprep.subr.mxu0 0.0
    %180 = vmatpush1.xpose.msra.mxu0 0.0
    %181 = vmatprep.subr.mxu0 0.0
    %182 = vmatpush1.xpose.msra.mxu0 0.0
    %183 = vmatprep.subr.mxu0 0.0
    %184 = vmatpush1.xpose.msra.mxu0 0.0
    %185 = vmatprep.subr.mxu0 0.0
    %186 = vmatpush1.xpose.msra.mxu0 0.0
    %187 = vmatprep.subr.mxu0 0.0
    %188 = vmatpush1.xpose.msra.mxu0 0.0
    %189 = vmatprep.subr.mxu0 0.0
    %190 = vmatpush1.xpose.msra.mxu0 0.0
    %191 = vmatprep.subr.mxu0 0.0
    %192 = vmatpush1.xpose.msra.mxu0 0.0
    %193 = vmatprep.subr.mxu0 0.0
    %194 = vmatpush1.xpose.msra.mxu0 0.0
    %195 = vmatprep.subr.mxu0 0.0
    %196 = vmatpush1.xpose.msra.mxu0 0.0
    %197 = vmatprep.subr.mxu0 0.0
    %198 = vmatpush1.xpose.msra.mxu0 0.0
    %199 = vmatprep.subr.mxu0 0.0
    %200 = vmatpush1.xpose.msra.mxu0 0.0
    %201 = vmatprep.subr.mxu0 0.0
    %202 = vmatpush1.xpose.msra.mxu0 0.0
    %203 = vmatprep.subr.mxu0 0.0
    %204 = vmatpush1.xpose.msra.mxu0 0.0
    %205 = vmatprep.subr.mxu0 0.0
    %206 = vmatpush1.xpose.msra.mxu0 0.0
    %207 = vmatprep.subr.mxu0 0.0
    %208 = vmatpush1.xpose.msra.mxu0 0.0
    %209 = vmatprep.subr.mxu0 0.0
    %210 = vmatpush1.xpose.msra.mxu0 0.0
    %211 = vmatprep.subr.mxu0 0.0
    %212 = vmatpush1.xpose.msra.mxu0 0.0
    %213 = vmatprep.mubr.f32.mxu0 0.0
    %214 = vmatmul.mubr.f32.gmra.mrb[0].mxu0 %v135
    %v215 = vpop.f32.mrb[0].mxu0
    %v216 = vadd.f32 0.0, %v215
    %v217 = vpop.f32.mrb[0].mxu0
    %218 = vdwg.mxu0
    %v219 = vld [vmem:[#allocation4] sm:$0x1]
    %221 = vset.pattern.permute.xlu0 0
    %222 = vperm.xlu0 %221, %v108
    %v223 = vpop.permute.xlu0 %222
    %v225 = vlaneseq
    %v226 = vshrl.u32 %v225, 7
    %v227 = vsub.s32 0, %v226
    %v228 = vrot.slane %v223, %v227
    %v229 = vmul.f32 %v228, %v219
    %v230 = vadd.f32 %v229, %v216
    %vm231 = vcmask 253952
    %232 = vst.msk [vmem:[#allocation4] sm:$0x1] %vm231, %v230
    %233 = vst.msk [vmem:[#allocation2] sm:$0x1] %vm127, %v105
    // Predicated region
    $region14: #{tpu_custom_call.1} parent=1 // pred_check
      %p234 = pneg %p12
    $region15: #{tpu_custom_call.1} parent=1 // pred_check_branch
      %236 = sbr.rel (%p234) target = $region17
    $region16: #{tpu_custom_call.1} parent=1 // pred_region
      %v237 = vld [vmem:[#allocation4] sm:$0x1]
      %v238 = vld [vmem:[#allocation3] sm:$0x1]
      %240 = vset.pattern.permute.xlu0 0
      %241 = vperm.xlu0 %240, %v238
      %v242 = vpop.permute.xlu0 %241
      %v244 = vlaneseq
      %v245 = vshrl.u32 %v244, 7
      %v246 = vsub.s32 0, %v245
      %v247 = vrot.slane %v242, %v246
      %v248 = vrcp.pop %v247
      %v249 = vmul.f32 %v237, %v248
      %250 = vst.msk [vmem:[#allocation5] sm:$0x1] %vm231, %v249
    $region17: #{tpu_custom_call.1} parent=1 // pred_fallthru
      _
    // Predicated region
    $region18: #{tpu_custom_call.1} parent=1 // pred_check
      _
    $region19: #{tpu_custom_call.1} parent=1 // pred_check_branch
      %252 = sbr.rel (0) target = $region21
    $region20: #{tpu_custom_call.1} parent=1 // pred_region
      %s254 = ssub.s32 16, 16
      %255 = vsyncadd [#allocation6], %s254
      %s257 = sshll.u32 [#allocation5], 4
      %s258 = int_to_ptr.vmem [resolvable:$true] %s257
      %260 = dma.vmem_to_hbm [thread:$0]  %s258, 16, %s2, [#allocation6]
    $region21: #{tpu_custom_call.1} parent=1 // pred_fallthru
      _
    // Predicated region
    $region22: #{tpu_custom_call.1} parent=1 // pred_check
      _
    $region23: #{tpu_custom_call.1} parent=1 // pred_check_branch
      %262 = sbr.rel (0) target = $region25
    $region24: #{tpu_custom_call.1} parent=1 // pred_region
      %263 = dma.done [#allocation6], 16
    $region25: #{tpu_custom_call.1} parent=1 // pred_fallthru
      _
    %264 = vsyncpa [#allocation6], 1

</llo_original>
